<compile_context>
chip_gen: v5e
topology: v5e:2x2
jax: 0.10.0
libtpu: 0.0.40
codegen_flags: <defaults>
</compile_context>

<pallas_src>
import functools

import jax
import jax.numpy as jnp
from jax.experimental import pallas as pl
from jax.experimental.pallas import tpu as pltpu


def _round_up(x, m):
    return ((x + m - 1) // m) * m


def _mlp_kernel(x_ref,
                w1_ref, b1_ref,
                w2_ref, b2_ref,
                w3_ref, b3_ref,
                w4_ref, b4_ref,
                s4_ref, t4_ref,
                o_ref):
    # x_ref: [12, T]  (features on sublanes, batch on lanes)
    xt = x_ref[...]

    # Block 1: Linear(12,57) -> Tanh   (BN(57) folded into W2/b2)
    h = jnp.tanh(jnp.dot(w1_ref[...], xt,
                         preferred_element_type=jnp.float32) + b1_ref[...])
    # Block 2: Linear(57,35) -> Tanh   (BN(35) folded into W3/b3)
    h = jnp.tanh(jnp.dot(w2_ref[...], h,
                         preferred_element_type=jnp.float32) + b2_ref[...])
    # Block 3: Linear(35,35) -> Tanh   (BN(35) folded into W4/b4)
    h = jnp.tanh(jnp.dot(w3_ref[...], h,
                         preferred_element_type=jnp.float32) + b3_ref[...])

    # Head: Linear(35,3) -> Softmax(over the 3 feature rows) -> BN(3)
    logits = (jnp.dot(w4_ref[...], h,
                      preferred_element_type=jnp.float32) + b4_ref[...])  # [3, T]
    m = jnp.max(logits, axis=0, keepdims=True)
    e = jnp.exp(logits - m)
    denom = jnp.sum(e, axis=0, keepdims=True)
    p = e * pl.reciprocal(denom, approx=True)
    o_ref[...] = p * s4_ref[...] + t4_ref[...]


@functools.partial(jax.jit, static_argnames=("tile_b",))
def location_mlp_forward(x, kparams, *, tile_b=2048):
    """x: [N, 12] float32. kparams: output of fold_params(). Returns [N, 3]."""
    n, f = x.shape
    eff_tile = min(tile_b, _round_up(n, 128))
    n_pad = _round_up(n, eff_tile)

    # Present batch on lanes: [12, N_pad] (zero padding is harmless, sliced off).
    xt = jnp.transpose(x)
    xt = jnp.pad(xt, ((0, 0), (0, n_pad - n)))

    grid = (n_pad // eff_tile,)

    # Cost hint for the XLA scheduler.
    per_row_flops = 2 * (12 * 57 + 57 * 35 + 35 * 35 + 35 * 3)
    per_row_trans = 57 + 35 + 35 + 3 + 1          # tanh x127, exp x3, rcp x1
    param_bytes = sum(int(p.size) * 4 for p in kparams)
    cost = pl.CostEstimate(
        flops=int(n_pad * per_row_flops),
        transcendentals=int(n_pad * per_row_trans),
        bytes_accessed=int(n_pad * (12 + 3) * 4 + param_bytes),
    )

    in_specs = [pl.BlockSpec((f, eff_tile), lambda i: (0, i))]
    # Weights / biases / BN params: full arrays, constant block index
    # -> stay VMEM-resident across grid steps.
    in_specs += [pl.BlockSpec(p.shape, lambda i: (0, 0)) for p in kparams]

    out_t = pl.pallas_call(
        _mlp_kernel,
        out_shape=jax.ShapeDtypeStruct((3, n_pad), jnp.float32),
        grid=grid,
        in_specs=in_specs,
        out_specs=pl.BlockSpec((3, eff_tile), lambda i: (0, i)),
        compiler_params=pltpu.CompilerParams(
            dimension_semantics=("parallel",)),
        cost_estimate=cost,
    )(xt, *kparams)

    return out_t[:, :n].T


# ----------------------------------------------------------------------------
# Parameter construction (deterministic, PyTorch-default-like) + reference.
# ----------------------------------------------------------------------------
def _bn_fold(key, feat):
    """Eval-mode BatchNorm params folded into per-feature scale/shift."""
    kg, kb, km, kv = jax.random.split(key, 4)
    gamma = 1.0 + 0.1 * jax.random.normal(kg, (1, feat), jnp.float32)
    beta = 0.1 * jax.random.normal(kb, (1, feat), jnp.float32)
    running_mean = 0.1 * jax.random.normal(km, (1, feat), jnp.float32)
    running_var = 1.0 + 0.1 * jax.random.uniform(kv, (1, feat), jnp.float32)
    eps = 1e-5
    scale = gamma / jnp.sqrt(running_var + eps)
    shift = beta - running_mean * scale
    return scale, shift


def _linear(key, fan_in, fan_out):
    """PyTorch nn.Linear default init: U(-1/sqrt(fan_in), 1/sqrt(fan_in))."""
    kw, kb = jax.random.split(key)
    bound = 1.0 / jnp.sqrt(jnp.float32(fan_in))
    w = jax.random.uniform(kw, (fan_in, fan_out), jnp.float32, -bound, bound)
    b = jax.random.uniform(kb, (1, fan_out), jnp.float32, -bound, bound)
    return w, b


def make_raw_params(key):
    keys = jax.random.split(key, 8)
    w1, b1 = _linear(keys[0], 12, 57)
    s1, t1 = _bn_fold(keys[1], 57)
    w2, b2 = _linear(keys[2], 57, 35)
    s2, t2 = _bn_fold(keys[3], 35)
    w3, b3 = _linear(keys[4], 35, 35)
    s3, t3 = _bn_fold(keys[5], 35)
    w4, b4 = _linear(keys[6], 35, 3)
    s4, t4 = _bn_fold(keys[7], 3)
    return (w1, b1, s1, t1, w2, b2, s2, t2,
            w3, b3, s3, t3, w4, b4, s4, t4)


def fold_params(raw):
    """Fold BN(k) of blocks 1-3 into the next linear; pre-transpose everything
    for the features-on-sublanes / batch-on-lanes kernel layout."""
    (w1, b1, s1, t1, w2, b2, s2, t2,
     w3, b3, s3, t3, w4, b4, s4, t4) = raw
    # (h*s + t) @ W + b  ==  h @ (diag(s) W) + (t @ W + b)
    w2e = w2 * s1.T
    b2e = t1 @ w2 + b2
    w3e = w3 * s2.T
    b3e = t2 @ w3 + b3
    w4e = w4 * s3.T
    b4e = t3 @ w4 + b4
    return (w1.T, b1.T,      # [57,12], [57,1]
            w2e.T, b2e.T,    # [35,57], [35,1]
            w3e.T, b3e.T,    # [35,35], [35,1]
            w4e.T, b4e.T,    # [ 3,35], [ 3,1]
            s4.T, t4.T)      # [ 3, 1], [ 3,1]


def reference_forward(x, raw):
    """Pure-JAX reference with the original (unfolded) parameters."""
    (w1, b1, s1, t1, w2, b2, s2, t2,
     w3, b3, s3, t3, w4, b4, s4, t4) = raw
    h = jnp.tanh(x @ w1 + b1) * s1 + t1
    h = jnp.tanh(h @ w2 + b2) * s2 + t2
    h = jnp.tanh(h @ w3 + b3) * s3 + t3
    logits = h @ w4 + b4
    p = jax.nn.softmax(logits, axis=1)
    return p * s4 + t4


if __name__ == "__main__":
    key = jax.random.PRNGKey(0)
    k_x, k_p = jax.random.split(key)

    # Small, deliberately non-multiple-of-128 batch to exercise the grid +
    # padding path (2 grid steps at tile_b=256).
    batch = 300
    x = jax.random.normal(k_x, (batch, 12), jnp.float32)

    raw_params = make_raw_params(k_p)
    kernel_params = fold_params(raw_params)

    out = location_mlp_forward(x, kernel_params, tile_b=256)
    out = jax.block_until_ready(out)

    ref = reference_forward(x, raw_params)
    assert out.shape == (batch, 3)
    max_err = jnp.max(jnp.abs(out - ref))
    # Tolerance loosened slightly for the EUP approximate reciprocal.
    assert jnp.allclose(out, ref, atol=5e-3, rtol=5e-3), (
        f"max abs err {max_err}")

    print("KERNEL_OK")
</pallas_src>

<mosaic_0001>
module attributes {stable_mosaic.version = 11 : i64} {
  func.func @_mlp_kernel(%arg0: i32, %arg1: memref<12x256xf32, #tpu.memory_space<vmem>>, %arg2: memref<57x12xf32, #tpu.memory_space<vmem>>, %arg3: memref<57x1xf32, #tpu.memory_space<vmem>>, %arg4: memref<35x57xf32, #tpu.memory_space<vmem>>, %arg5: memref<35x1xf32, #tpu.memory_space<vmem>>, %arg6: memref<35x35xf32, #tpu.memory_space<vmem>>, %arg7: memref<35x1xf32, #tpu.memory_space<vmem>>, %arg8: memref<3x35xf32, #tpu.memory_space<vmem>>, %arg9: memref<3x1xf32, #tpu.memory_space<vmem>>, %arg10: memref<3x1xf32, #tpu.memory_space<vmem>>, %arg11: memref<3x1xf32, #tpu.memory_space<vmem>>, %arg12: memref<3x256xf32, #tpu.memory_space<vmem>>) attributes {dimension_semantics = [#tpu.dimension_semantics<parallel>], iteration_bounds = array<i64: 2>, scalar_prefetch = 0 : i64, scratch_operands = 0 : i64, tpu.core_type = #tpu.core_type<tc>, window_params = [{transform_indices = @transform_0, window_bounds = array<i64: 12, 256>}, {pipeline_mode = #tpu.pipeline_mode<synchronous>, transform_indices = @transform_1, window_bounds = array<i64: 57, 12>}, {pipeline_mode = #tpu.pipeline_mode<synchronous>, transform_indices = @transform_2, window_bounds = array<i64: 57, 1>}, {pipeline_mode = #tpu.pipeline_mode<synchronous>, transform_indices = @transform_3, window_bounds = array<i64: 35, 57>}, {pipeline_mode = #tpu.pipeline_mode<synchronous>, transform_indices = @transform_4, window_bounds = array<i64: 35, 1>}, {pipeline_mode = #tpu.pipeline_mode<synchronous>, transform_indices = @transform_5, window_bounds = array<i64: 35, 35>}, {pipeline_mode = #tpu.pipeline_mode<synchronous>, transform_indices = @transform_6, window_bounds = array<i64: 35, 1>}, {pipeline_mode = #tpu.pipeline_mode<synchronous>, transform_indices = @transform_7, window_bounds = array<i64: 3, 35>}, {pipeline_mode = #tpu.pipeline_mode<synchronous>, transform_indices = @transform_8, window_bounds = array<i64: 3, 1>}, {pipeline_mode = #tpu.pipeline_mode<synchronous>, transform_indices = @transform_9, window_bounds = array<i64: 3, 1>}, {pipeline_mode = #tpu.pipeline_mode<synchronous>, transform_indices = @transform_10, window_bounds = array<i64: 3, 1>}, {transform_indices = @transform_11, window_bounds = array<i64: 3, 256>}]} {
    %c0 = arith.constant 0 : index
    %c0_0 = arith.constant 0 : index
    %0 = vector.load %arg1[%c0, %c0_0] : memref<12x256xf32, #tpu.memory_space<vmem>>, vector<12x256xf32>
    %c0_1 = arith.constant 0 : index
    %c0_2 = arith.constant 0 : index
    %1 = vector.load %arg2[%c0_1, %c0_2] : memref<57x12xf32, #tpu.memory_space<vmem>>, vector<57x12xf32>
    %cst = arith.constant dense<0.000000e+00> : vector<57x256xf32>
    %2 = tpu.matmul %1, %0, %cst {dimension_numbers = #tpu.dot_dimension_numbers<[1], [0], [0], [1], [0, 0, 1, 1], [], []>} : vector<57x12xf32>, vector<12x256xf32>, vector<57x256xf32> -> vector<57x256xf32>
    %c0_3 = arith.constant 0 : index
    %c0_4 = arith.constant 0 : index
    %3 = vector.load %arg3[%c0_3, %c0_4] : memref<57x1xf32, #tpu.memory_space<vmem>>, vector<57x1xf32>
    %4 = vector.broadcast %3 : vector<57x1xf32> to vector<57x256xf32>
    %5 = arith.addf %2, %4 : vector<57x256xf32>
    %6 = math.tanh %5 : vector<57x256xf32>
    %c0_5 = arith.constant 0 : index
    %c0_6 = arith.constant 0 : index
    %7 = vector.load %arg4[%c0_5, %c0_6] : memref<35x57xf32, #tpu.memory_space<vmem>>, vector<35x57xf32>
    %cst_7 = arith.constant dense<0.000000e+00> : vector<35x256xf32>
    %8 = tpu.matmul %7, %6, %cst_7 {dimension_numbers = #tpu.dot_dimension_numbers<[1], [0], [0], [1], [0, 0, 1, 1], [], []>} : vector<35x57xf32>, vector<57x256xf32>, vector<35x256xf32> -> vector<35x256xf32>
    %c0_8 = arith.constant 0 : index
    %c0_9 = arith.constant 0 : index
    %9 = vector.load %arg5[%c0_8, %c0_9] : memref<35x1xf32, #tpu.memory_space<vmem>>, vector<35x1xf32>
    %10 = vector.broadcast %9 : vector<35x1xf32> to vector<35x256xf32>
    %11 = arith.addf %8, %10 : vector<35x256xf32>
    %12 = math.tanh %11 : vector<35x256xf32>
    %c0_10 = arith.constant 0 : index
    %c0_11 = arith.constant 0 : index
    %13 = vector.load %arg6[%c0_10, %c0_11] : memref<35x35xf32, #tpu.memory_space<vmem>>, vector<35x35xf32>
    %cst_12 = arith.constant dense<0.000000e+00> : vector<35x256xf32>
    %14 = tpu.matmul %13, %12, %cst_12 {dimension_numbers = #tpu.dot_dimension_numbers<[1], [0], [0], [1], [0, 0, 1, 1], [], []>} : vector<35x35xf32>, vector<35x256xf32>, vector<35x256xf32> -> vector<35x256xf32>
    %c0_13 = arith.constant 0 : index
    %c0_14 = arith.constant 0 : index
    %15 = vector.load %arg7[%c0_13, %c0_14] : memref<35x1xf32, #tpu.memory_space<vmem>>, vector<35x1xf32>
    %16 = vector.broadcast %15 : vector<35x1xf32> to vector<35x256xf32>
    %17 = arith.addf %14, %16 : vector<35x256xf32>
    %18 = math.tanh %17 : vector<35x256xf32>
    %c0_15 = arith.constant 0 : index
    %c0_16 = arith.constant 0 : index
    %19 = vector.load %arg8[%c0_15, %c0_16] : memref<3x35xf32, #tpu.memory_space<vmem>>, vector<3x35xf32>
    %cst_17 = arith.constant dense<0.000000e+00> : vector<3x256xf32>
    %20 = tpu.matmul %19, %18, %cst_17 {dimension_numbers = #tpu.dot_dimension_numbers<[1], [0], [0], [1], [0, 0, 1, 1], [], []>} : vector<3x35xf32>, vector<35x256xf32>, vector<3x256xf32> -> vector<3x256xf32>
    %c0_18 = arith.constant 0 : index
    %c0_19 = arith.constant 0 : index
    %21 = vector.load %arg9[%c0_18, %c0_19] : memref<3x1xf32, #tpu.memory_space<vmem>>, vector<3x1xf32>
    %22 = vector.broadcast %21 : vector<3x1xf32> to vector<3x256xf32>
    %23 = arith.addf %20, %22 : vector<3x256xf32>
    %cst_20 = arith.constant dense<0xFF800000> : vector<256xf32>
    %24 = vector.multi_reduction <maximumf>, %23, %cst_20 [0] : vector<3x256xf32> to vector<256xf32>
    %25 = vector.shape_cast %24 : vector<256xf32> to vector<1x256xf32>
    %26 = vector.broadcast %25 : vector<1x256xf32> to vector<3x256xf32>
    %27 = arith.subf %23, %26 : vector<3x256xf32>
    %28 = math.exp %27 : vector<3x256xf32>
    %cst_21 = arith.constant dense<0.000000e+00> : vector<256xf32>
    %29 = vector.multi_reduction <add>, %28, %cst_21 [0] : vector<3x256xf32> to vector<256xf32>
    %30 = vector.shape_cast %29 : vector<256xf32> to vector<1x256xf32>
    %31 = tpu.reciprocal %30 {approx = true} : vector<1x256xf32> -> vector<1x256xf32>
    %32 = vector.broadcast %31 : vector<1x256xf32> to vector<3x256xf32>
    %33 = arith.mulf %28, %32 : vector<3x256xf32>
    %c0_22 = arith.constant 0 : index
    %c0_23 = arith.constant 0 : index
    %34 = vector.load %arg10[%c0_22, %c0_23] : memref<3x1xf32, #tpu.memory_space<vmem>>, vector<3x1xf32>
    %35 = vector.broadcast %34 : vector<3x1xf32> to vector<3x256xf32>
    %36 = arith.mulf %33, %35 : vector<3x256xf32>
    %c0_24 = arith.constant 0 : index
    %c0_25 = arith.constant 0 : index
    %37 = vector.load %arg11[%c0_24, %c0_25] : memref<3x1xf32, #tpu.memory_space<vmem>>, vector<3x1xf32>
    %38 = vector.broadcast %37 : vector<3x1xf32> to vector<3x256xf32>
    %39 = arith.addf %36, %38 : vector<3x256xf32>
    %c0_26 = arith.constant 0 : index
    %c0_27 = arith.constant 0 : index
    %40 = vector.load %arg12[%c0_26, %c0_27] : memref<3x256xf32, #tpu.memory_space<vmem>>, vector<3x256xf32>
    tpu.vector_store %arg12[%c0_26, %c0_27], %39 {strides = array<i32>} : memref<3x256xf32, #tpu.memory_space<vmem>>, vector<3x256xf32>,
    return
  }
  func.func @transform_0(%arg0: i32) -> (i32, i32) {
    %c0_i32 = arith.constant 0 : i32
    %c0_i32_0 = arith.constant 0 : i32
    return %c0_i32, %arg0 : i32, i32
  }
  func.func @transform_1(%arg0: i32) -> (i32, i32) {
    %c0_i32 = arith.constant 0 : i32
    %c0_i32_0 = arith.constant 0 : i32
    %c0_i32_1 = arith.constant 0 : i32
    return %c0_i32, %c0_i32_0 : i32, i32
  }
  func.func @transform_2(%arg0: i32) -> (i32, i32) {
    %c0_i32 = arith.constant 0 : i32
    %c0_i32_0 = arith.constant 0 : i32
    %c0_i32_1 = arith.constant 0 : i32
    return %c0_i32, %c0_i32_0 : i32, i32
  }
  func.func @transform_3(%arg0: i32) -> (i32, i32) {
    %c0_i32 = arith.constant 0 : i32
    %c0_i32_0 = arith.constant 0 : i32
    %c0_i32_1 = arith.constant 0 : i32
    return %c0_i32, %c0_i32_0 : i32, i32
  }
  func.func @transform_4(%arg0: i32) -> (i32, i32) {
    %c0_i32 = arith.constant 0 : i32
    %c0_i32_0 = arith.constant 0 : i32
    %c0_i32_1 = arith.constant 0 : i32
    return %c0_i32, %c0_i32_0 : i32, i32
  }
  func.func @transform_5(%arg0: i32) -> (i32, i32) {
    %c0_i32 = arith.constant 0 : i32
    %c0_i32_0 = arith.constant 0 : i32
    %c0_i32_1 = arith.constant 0 : i32
    return %c0_i32, %c0_i32_0 : i32, i32
  }
  func.func @transform_6(%arg0: i32) -> (i32, i32) {
    %c0_i32 = arith.constant 0 : i32
    %c0_i32_0 = arith.constant 0 : i32
    %c0_i32_1 = arith.constant 0 : i32
    return %c0_i32, %c0_i32_0 : i32, i32
  }
  func.func @transform_7(%arg0: i32) -> (i32, i32) {
    %c0_i32 = arith.constant 0 : i32
    %c0_i32_0 = arith.constant 0 : i32
    %c0_i32_1 = arith.constant 0 : i32
    return %c0_i32, %c0_i32_0 : i32, i32
  }
  func.func @transform_8(%arg0: i32) -> (i32, i32) {
    %c0_i32 = arith.constant 0 : i32
    %c0_i32_0 = arith.constant 0 : i32
    %c0_i32_1 = arith.constant 0 : i32
    return %c0_i32, %c0_i32_0 : i32, i32
  }
  func.func @transform_9(%arg0: i32) -> (i32, i32) {
    %c0_i32 = arith.constant 0 : i32
    %c0_i32_0 = arith.constant 0 : i32
    %c0_i32_1 = arith.constant 0 : i32
    return %c0_i32, %c0_i32_0 : i32, i32
  }
  func.func @transform_10(%arg0: i32) -> (i32, i32) {
    %c0_i32 = arith.constant 0 : i32
    %c0_i32_0 = arith.constant 0 : i32
    %c0_i32_1 = arith.constant 0 : i32
    return %c0_i32, %c0_i32_0 : i32, i32
  }
  func.func @transform_11(%arg0: i32) -> (i32, i32) {
    %c0_i32 = arith.constant 0 : i32
    %c0_i32_0 = arith.constant 0 : i32
    return %c0_i32, %arg0 : i32, i32
  }
}

</mosaic_0001>

<llo_original>
// kernel: location_mlp_forward.1
$region0: #{location_mlp_forward.1}
  #allocation0 [shape = 'u32[]', space=smem, size = 0x4, offset = 0x4, fixed_abs, tag = 'smem constant byte address 0x4 - core index']
  #allocation1 [shape = 'u32[72,128]{1,0:T(1,128)}', space=vmem, size = 0x9000, scoped, tag = 'internal scratch']
  %s0 = inlined_call_operand.vmem [shape: f32[12,512], index: 0, kind: input, shape index: {}]
  %s1 = inlined_call_operand.vmem [shape: f32[57,12], index: 1, kind: input, shape index: {}]
  %s2 = inlined_call_operand.vmem [shape: f32[57,1], index: 2, kind: input, shape index: {}]
  %s3 = inlined_call_operand.vmem [shape: f32[35,57], index: 3, kind: input, shape index: {}]
  %s4 = inlined_call_operand.vmem [shape: f32[35,1], index: 4, kind: input, shape index: {}]
  %s5 = inlined_call_operand.vmem [shape: f32[35,35], index: 5, kind: input, shape index: {}]
  %s6 = inlined_call_operand.vmem [shape: f32[35,1], index: 6, kind: input, shape index: {}]
  %s7 = inlined_call_operand.vmem [shape: f32[3,35], index: 7, kind: input, shape index: {}]
  %s8 = inlined_call_operand.vmem [shape: f32[3,1], index: 8, kind: input, shape index: {}]
  %s9 = inlined_call_operand.vmem [shape: f32[3,1], index: 9, kind: input, shape index: {}]
  %s10 = inlined_call_operand.vmem [shape: f32[3,1], index: 10, kind: input, shape index: {}]
  %s11 = inlined_call_operand.vmem [shape: f32[3,512], index: 11, kind: output, shape index: {}]
  %s12 = sld [smem:[#allocation0]]
  $region100: #{location_mlp_forward.1} parent=0
    _
  %s14 = ssub.s32 1, %s12
  %s15 = scalar_select 0, %s14, %s12
  $region1: #{location_mlp_forward.1} parent=0
    #allocation2 [shape = 'u8[32768]{0}', space=vmem, size = 0x8000, scoped, tag = 'input window, operand 0']
    loop: start=0, step=1, limit=4
    $region2: #{location_mlp_forward.1} parent=1 // loop_pre_header
      _
    $region3: #{location_mlp_forward.1} parent=1 // loop_header
      %s17 = sphi 0, %s21
      %p18 = scmp.ge.s32.totalorder %s17, 4
      %s27 = sphi 0, %s29
      %s30 = sphi 0, %s27
      %s31 = sphi 0, %s30
      %s47 = sphi 0, %s31
      %s51 = sphi 0, %s51
      %s53 = sphi 0, %s51
      %s54 = sphi 0, %s53
      %s68 = sphi 0, %s54
      %s72 = sphi 0, %s72
      %s74 = sphi 0, %s72
      %s75 = sphi 0, %s74
      %s89 = sphi 0, %s75
      %s93 = sphi 0, %s93
      %s95 = sphi 0, %s93
      %s96 = sphi 0, %s95
      %s110 = sphi 0, %s96
      %s114 = sphi 0, %s114
      %s116 = sphi 0, %s114
      %s117 = sphi 0, %s116
      %s131 = sphi 0, %s117
      %s135 = sphi 0, %s135
      %s137 = sphi 0, %s135
      %s138 = sphi 0, %s137
      %s152 = sphi 0, %s138
      %s156 = sphi 0, %s156
      %s158 = sphi 0, %s156
      %s159 = sphi 0, %s158
      %s173 = sphi 0, %s159
      %s177 = sphi 0, %s177
      %s179 = sphi 0, %s177
      %s180 = sphi 0, %s179
      %s194 = sphi 0, %s180
      %s198 = sphi 0, %s198
      %s200 = sphi 0, %s198
      %s201 = sphi 0, %s200
      %s215 = sphi 0, %s201
      %s219 = sphi 0, %s219
      %s221 = sphi 0, %s219
      %s222 = sphi 0, %s221
      %s236 = sphi 0, %s222
      %s240 = sphi 0, %s240
      %s242 = sphi 0, %s240
      %s243 = sphi 0, %s242
      %s257 = sphi 0, %s243
      %s263 = sphi 0, %s265
      %s266 = sphi 0, %s263
      %s267 = sphi 0, %s266
      %s283 = sphi 0, %s267
    $region4: #{location_mlp_forward.1} parent=1 // loop_header_branch
      %20 = sbr.rel (%p18) target = $region8
    $region5: #{location_mlp_forward.1} parent=1 // loop_body
      %s22 = ssub.s32 %s17, 1
      %s23 = ssub.s32 %s17, 2
      %s24 = sadd.s32 %s17, 1
      %s25 = ssub.s32 %s17, %s24
      %p26 = scmp.eq.s32.totalorder %s25, 0
      %s28 = sadd.s32 %s27, 1
      %s29 = scalar_select %p26, %s27, %s28
      %p32 = pneg %p26
      %p33 = scmp.eq.s32.totalorder %s17, 1
      %p34 = por %p32, %p33
      %p35 = scmp.ne.s32.totalorder %s27, %s30
      %p36 = scmp.eq.s32.totalorder %s17, 0
      %p37 = por %p35, %p36
      %p38 = scmp.ne.s32.totalorder %s27, %s30
      %p39 = scmp.eq.s32.totalorder %s22, 1
      %p40 = por %p38, %p39
      %p41 = scmp.ne.s32.totalorder %s30, %s31
      %p42 = scmp.eq.s32.totalorder %s22, 0
      %p43 = por %p41, %p42
      %p44 = scmp.ne.s32.totalorder %s30, %s31
      %p45 = scmp.eq.s32.totalorder %s23, 1
      %p46 = por %p44, %p45
      %p48 = scmp.ne.s32.totalorder %s31, %s47
      %p49 = scmp.eq.s32.totalorder %s23, 0
      %p50 = por %p48, %p49
      %s52 = sadd.s32 %s51, 1
      %p55 = scmp.eq.s32.totalorder %s17, 1
      %p56 = scmp.ne.s32.totalorder %s51, %s53
      %p57 = scmp.eq.s32.totalorder %s17, 0
      %p58 = por %p56, %p57
      %p59 = scmp.ne.s32.totalorder %s51, %s53
      %p60 = scmp.eq.s32.totalorder %s22, 1
      %p61 = por %p59, %p60
      %p62 = scmp.ne.s32.totalorder %s53, %s54
      %p63 = scmp.eq.s32.totalorder %s22, 0
      %p64 = por %p62, %p63
      %p65 = scmp.ne.s32.totalorder %s53, %s54
      %p66 = scmp.eq.s32.totalorder %s23, 1
      %p67 = por %p65, %p66
      %p69 = scmp.ne.s32.totalorder %s54, %s68
      %p70 = scmp.eq.s32.totalorder %s23, 0
      %p71 = por %p69, %p70
      %s73 = sadd.s32 %s72, 1
      %p76 = scmp.eq.s32.totalorder %s17, 1
      %p77 = scmp.ne.s32.totalorder %s72, %s74
      %p78 = scmp.eq.s32.totalorder %s17, 0
      %p79 = por %p77, %p78
      %p80 = scmp.ne.s32.totalorder %s72, %s74
      %p81 = scmp.eq.s32.totalorder %s22, 1
      %p82 = por %p80, %p81
      %p83 = scmp.ne.s32.totalorder %s74, %s75
      %p84 = scmp.eq.s32.totalorder %s22, 0
      %p85 = por %p83, %p84
      %p86 = scmp.ne.s32.totalorder %s74, %s75
      %p87 = scmp.eq.s32.totalorder %s23, 1
      %p88 = por %p86, %p87
      %p90 = scmp.ne.s32.totalorder %s75, %s89
      %p91 = scmp.eq.s32.totalorder %s23, 0
      %p92 = por %p90, %p91
      %s94 = sadd.s32 %s93, 1
      %p97 = scmp.eq.s32.totalorder %s17, 1
      %p98 = scmp.ne.s32.totalorder %s93, %s95
      %p99 = scmp.eq.s32.totalorder %s17, 0
      %p100 = por %p98, %p99
      %p101 = scmp.ne.s32.totalorder %s93, %s95
      %p102 = scmp.eq.s32.totalorder %s22, 1
      %p103 = por %p101, %p102
      %p104 = scmp.ne.s32.totalorder %s95, %s96
      %p105 = scmp.eq.s32.totalorder %s22, 0
      %p106 = por %p104, %p105
      %p107 = scmp.ne.s32.totalorder %s95, %s96
      %p108 = scmp.eq.s32.totalorder %s23, 1
      %p109 = por %p107, %p108
      %p111 = scmp.ne.s32.totalorder %s96, %s110
      %p112 = scmp.eq.s32.totalorder %s23, 0
      %p113 = por %p111, %p112
      %s115 = sadd.s32 %s114, 1
      %p118 = scmp.eq.s32.totalorder %s17, 1
      %p119 = scmp.ne.s32.totalorder %s114, %s116
      %p120 = scmp.eq.s32.totalorder %s17, 0
      %p121 = por %p119, %p120
      %p122 = scmp.ne.s32.totalorder %s114, %s116
      %p123 = scmp.eq.s32.totalorder %s22, 1
      %p124 = por %p122, %p123
      %p125 = scmp.ne.s32.totalorder %s116, %s117
      %p126 = scmp.eq.s32.totalorder %s22, 0
      %p127 = por %p125, %p126
      %p128 = scmp.ne.s32.totalorder %s116, %s117
      %p129 = scmp.eq.s32.totalorder %s23, 1
      %p130 = por %p128, %p129
      %p132 = scmp.ne.s32.totalorder %s117, %s131
      %p133 = scmp.eq.s32.totalorder %s23, 0
      %p134 = por %p132, %p133
      %s136 = sadd.s32 %s135, 1
      %p139 = scmp.eq.s32.totalorder %s17, 1
      %p140 = scmp.ne.s32.totalorder %s135, %s137
      %p141 = scmp.eq.s32.totalorder %s17, 0
      %p142 = por %p140, %p141
      %p143 = scmp.ne.s32.totalorder %s135, %s137
      %p144 = scmp.eq.s32.totalorder %s22, 1
      %p145 = por %p143, %p144
      %p146 = scmp.ne.s32.totalorder %s137, %s138
      %p147 = scmp.eq.s32.totalorder %s22, 0
      %p148 = por %p146, %p147
      %p149 = scmp.ne.s32.totalorder %s137, %s138
      %p150 = scmp.eq.s32.totalorder %s23, 1
      %p151 = por %p149, %p150
      %p153 = scmp.ne.s32.totalorder %s138, %s152
      %p154 = scmp.eq.s32.totalorder %s23, 0
      %p155 = por %p153, %p154
      %s157 = sadd.s32 %s156, 1
      %p160 = scmp.eq.s32.totalorder %s17, 1
      %p161 = scmp.ne.s32.totalorder %s156, %s158
      %p162 = scmp.eq.s32.totalorder %s17, 0
      %p163 = por %p161, %p162
      %p164 = scmp.ne.s32.totalorder %s156, %s158
      %p165 = scmp.eq.s32.totalorder %s22, 1
      %p166 = por %p164, %p165
      %p167 = scmp.ne.s32.totalorder %s158, %s159
      %p168 = scmp.eq.s32.totalorder %s22, 0
      %p169 = por %p167, %p168
      %p170 = scmp.ne.s32.totalorder %s158, %s159
      %p171 = scmp.eq.s32.totalorder %s23, 1
      %p172 = por %p170, %p171
      %p174 = scmp.ne.s32.totalorder %s159, %s173
      %p175 = scmp.eq.s32.totalorder %s23, 0
      %p176 = por %p174, %p175
      %s178 = sadd.s32 %s177, 1
      %p181 = scmp.eq.s32.totalorder %s17, 1
      %p182 = scmp.ne.s32.totalorder %s177, %s179
      %p183 = scmp.eq.s32.totalorder %s17, 0
      %p184 = por %p182, %p183
      %p185 = scmp.ne.s32.totalorder %s177, %s179
      %p186 = scmp.eq.s32.totalorder %s22, 1
      %p187 = por %p185, %p186
      %p188 = scmp.ne.s32.totalorder %s179, %s180
      %p189 = scmp.eq.s32.totalorder %s22, 0
      %p190 = por %p188, %p189
      %p191 = scmp.ne.s32.totalorder %s179, %s180
      %p192 = scmp.eq.s32.totalorder %s23, 1
      %p193 = por %p191, %p192
      %p195 = scmp.ne.s32.totalorder %s180, %s194
      %p196 = scmp.eq.s32.totalorder %s23, 0
      %p197 = por %p195, %p196
      %s199 = sadd.s32 %s198, 1
      %p202 = scmp.eq.s32.totalorder %s17, 1
      %p203 = scmp.ne.s32.totalorder %s198, %s200
      %p204 = scmp.eq.s32.totalorder %s17, 0
      %p205 = por %p203, %p204
      %p206 = scmp.ne.s32.totalorder %s198, %s200
      %p207 = scmp.eq.s32.totalorder %s22, 1
      %p208 = por %p206, %p207
      %p209 = scmp.ne.s32.totalorder %s200, %s201
      %p210 = scmp.eq.s32.totalorder %s22, 0
      %p211 = por %p209, %p210
      %p212 = scmp.ne.s32.totalorder %s200, %s201
      %p213 = scmp.eq.s32.totalorder %s23, 1
      %p214 = por %p212, %p213
      %p216 = scmp.ne.s32.totalorder %s201, %s215
      %p217 = scmp.eq.s32.totalorder %s23, 0
      %p218 = por %p216, %p217
      %s220 = sadd.s32 %s219, 1
      %p223 = scmp.eq.s32.totalorder %s17, 1
      %p224 = scmp.ne.s32.totalorder %s219, %s221
      %p225 = scmp.eq.s32.totalorder %s17, 0
      %p226 = por %p224, %p225
      %p227 = scmp.ne.s32.totalorder %s219, %s221
      %p228 = scmp.eq.s32.totalorder %s22, 1
      %p229 = por %p227, %p228
      %p230 = scmp.ne.s32.totalorder %s221, %s222
      %p231 = scmp.eq.s32.totalorder %s22, 0
      %p232 = por %p230, %p231
      %p233 = scmp.ne.s32.totalorder %s221, %s222
      %p234 = scmp.eq.s32.totalorder %s23, 1
      %p235 = por %p233, %p234
      %p237 = scmp.ne.s32.totalorder %s222, %s236
      %p238 = scmp.eq.s32.totalorder %s23, 0
      %p239 = por %p237, %p238
      %s241 = sadd.s32 %s240, 1
      %p244 = scmp.eq.s32.totalorder %s17, 1
      %p245 = scmp.ne.s32.totalorder %s240, %s242
      %p246 = scmp.eq.s32.totalorder %s17, 0
      %p247 = por %p245, %p246
      %p248 = scmp.ne.s32.totalorder %s240, %s242
      %p249 = scmp.eq.s32.totalorder %s22, 1
      %p250 = por %p248, %p249
      %p251 = scmp.ne.s32.totalorder %s242, %s243
      %p252 = scmp.eq.s32.totalorder %s22, 0
      %p253 = por %p251, %p252
      %p254 = scmp.ne.s32.totalorder %s242, %s243
      %p255 = scmp.eq.s32.totalorder %s23, 1
      %p256 = por %p254, %p255
      %p258 = scmp.ne.s32.totalorder %s243, %s257
      %p259 = scmp.eq.s32.totalorder %s23, 0
      %p260 = por %p258, %p259
      %s261 = ssub.s32 %s17, %s24
      %p262 = scmp.eq.s32.totalorder %s261, 0
      %s264 = sadd.s32 %s263, 1
      %s265 = scalar_select %p262, %s263, %s264
      %p268 = pneg %p262
      %p269 = scmp.eq.s32.totalorder %s17, 1
      %p270 = por %p268, %p269
      %p271 = scmp.ne.s32.totalorder %s263, %s266
      %p272 = scmp.eq.s32.totalorder %s17, 0
      %p273 = por %p271, %p272
      %p274 = scmp.ne.s32.totalorder %s263, %s266
      %p275 = scmp.eq.s32.totalorder %s22, 1
      %p276 = por %p274, %p275
      %p277 = scmp.ne.s32.totalorder %s266, %s267
      %p278 = scmp.eq.s32.totalorder %s22, 0
      %p279 = por %p277, %p278
      %p280 = scmp.ne.s32.totalorder %s266, %s267
      %p281 = scmp.eq.s32.totalorder %s23, 1
      %p282 = por %p280, %p281
      %p284 = scmp.ne.s32.totalorder %s267, %s283
      %p285 = scmp.eq.s32.totalorder %s23, 0
      %p286 = por %p284, %p285
      %p287 = scmp.le.s32.totalorder 1, %s17
      %p288 = scmp.lt.s32.totalorder %s17, 3
      %p289 = pnand %p287, %p288
      %p290 = pneg %p289
      // Predicated region
      $region9: #{location_mlp_forward.1} parent=5 // pred_check
        _
      $region10: #{location_mlp_forward.1} parent=5 // pred_check_branch
        %292 = sbr.rel (%p289) target = $region12
      $region11: #{location_mlp_forward.1} parent=5 // pred_region
        %s293 = ssub.s32 %s17, 1
        // Predicated region
        $region13: #{location_mlp_forward.1} parent=11 // pred_check
          %p294 = pneg %p64
        $region14: #{location_mlp_forward.1} parent=11 // pred_check_branch
          %296 = sbr.rel (%p294) target = $region16
        $region15: #{location_mlp_forward.1} parent=11 // pred_region
          _
        $region16: #{location_mlp_forward.1} parent=11 // pred_fallthru
          _
        // Predicated region
        $region17: #{location_mlp_forward.1} parent=11 // pred_check
          %p297 = pneg %p85
        $region18: #{location_mlp_forward.1} parent=11 // pred_check_branch
          %299 = sbr.rel (%p297) target = $region20
        $region19: #{location_mlp_forward.1} parent=11 // pred_region
          _
        $region20: #{location_mlp_forward.1} parent=11 // pred_fallthru
          _
        // Predicated region
        $region21: #{location_mlp_forward.1} parent=11 // pred_check
          %p300 = pneg %p106
        $region22: #{location_mlp_forward.1} parent=11 // pred_check_branch
          %302 = sbr.rel (%p300) target = $region24
        $region23: #{location_mlp_forward.1} parent=11 // pred_region
          _
        $region24: #{location_mlp_forward.1} parent=11 // pred_fallthru
          _
        // Predicated region
        $region25: #{location_mlp_forward.1} parent=11 // pred_check
          %p303 = pneg %p127
        $region26: #{location_mlp_forward.1} parent=11 // pred_check_branch
          %305 = sbr.rel (%p303) target = $region28
        $region27: #{location_mlp_forward.1} parent=11 // pred_region
          _
        $region28: #{location_mlp_forward.1} parent=11 // pred_fallthru
          _
        // Predicated region
        $region29: #{location_mlp_forward.1} parent=11 // pred_check
          %p306 = pneg %p148
        $region30: #{location_mlp_forward.1} parent=11 // pred_check_branch
          %308 = sbr.rel (%p306) target = $region32
        $region31: #{location_mlp_forward.1} parent=11 // pred_region
          _
        $region32: #{location_mlp_forward.1} parent=11 // pred_fallthru
          _
        // Predicated region
        $region33: #{location_mlp_forward.1} parent=11 // pred_check
          %p309 = pneg %p169
        $region34: #{location_mlp_forward.1} parent=11 // pred_check_branch
          %311 = sbr.rel (%p309) target = $region36
        $region35: #{location_mlp_forward.1} parent=11 // pred_region
          _
        $region36: #{location_mlp_forward.1} parent=11 // pred_fallthru
          _
        // Predicated region
        $region37: #{location_mlp_forward.1} parent=11 // pred_check
          %p312 = pneg %p190
        $region38: #{location_mlp_forward.1} parent=11 // pred_check_branch
          %314 = sbr.rel (%p312) target = $region40
        $region39: #{location_mlp_forward.1} parent=11 // pred_region
          _
        $region40: #{location_mlp_forward.1} parent=11 // pred_fallthru
          _
        // Predicated region
        $region41: #{location_mlp_forward.1} parent=11 // pred_check
          %p315 = pneg %p211
        $region42: #{location_mlp_forward.1} parent=11 // pred_check_branch
          %317 = sbr.rel (%p315) target = $region44
        $region43: #{location_mlp_forward.1} parent=11 // pred_region
          _
        $region44: #{location_mlp_forward.1} parent=11 // pred_fallthru
          _
        // Predicated region
        $region45: #{location_mlp_forward.1} parent=11 // pred_check
          %p318 = pneg %p232
        $region46: #{location_mlp_forward.1} parent=11 // pred_check_branch
          %320 = sbr.rel (%p318) target = $region48
        $region47: #{location_mlp_forward.1} parent=11 // pred_region
          _
        $region48: #{location_mlp_forward.1} parent=11 // pred_fallthru
          _
        // Predicated region
        $region49: #{location_mlp_forward.1} parent=11 // pred_check
          %p321 = pneg %p253
        $region50: #{location_mlp_forward.1} parent=11 // pred_check_branch
          %323 = sbr.rel (%p321) target = $region52
        $region51: #{location_mlp_forward.1} parent=11 // pred_region
          _
        $region52: #{location_mlp_forward.1} parent=11 // pred_fallthru
          _
      $region12: #{location_mlp_forward.1} parent=5 // pred_fallthru
        _
      %p324 = scmp.lt.s32.totalorder %s17, 2
      // Predicated region
      $region53: #{location_mlp_forward.1} parent=5 // pred_check
        %p325 = pneg %p324
      $region54: #{location_mlp_forward.1} parent=5 // pred_check_branch
        %327 = sbr.rel (%p325) target = $region56
      $region55: #{location_mlp_forward.1} parent=5 // pred_region
        // Predicated region
        $region57: #{location_mlp_forward.1} parent=55 // pred_check
          %p328 = pneg %p37
        $region58: #{location_mlp_forward.1} parent=55 // pred_check_branch
          %330 = sbr.rel (%p328) target = $region60
        $region59: #{location_mlp_forward.1} parent=55 // pred_region
          %s331 = sand.u32 %s27, 1
          %s332 = sand.u32 %s27, 1
          %s333 = smul.addr %s332, 32
          %s334 = scalar_lea.vmem [#allocation2], %s333
          %s335 = smul.u32 2, %s17
          %s336 = smul.addr %s335, 8
          %s337 = scalar_lea.vmem %s0, %s336
          // Predicated region
          $region61: #{location_mlp_forward.1} parent=59 // pred_check
            _
          $region62: #{location_mlp_forward.1} parent=59 // pred_check_branch
            %339 = sbr.rel (0) target = $region64
          $region63: #{location_mlp_forward.1} parent=59 // pred_region
            // Predicated region
            $region65: #{location_mlp_forward.1} parent=63 // pred_check
              _
            $region66: #{location_mlp_forward.1} parent=63 // pred_check_branch
              %341 = sbr.rel (0) target = $region68
            $region67: #{location_mlp_forward.1} parent=63 // pred_region
              loop: start=0, step=1, limit=1
              $region69: #{location_mlp_forward.1} parent=67 // loop_pre_header
                _
              $region70: #{location_mlp_forward.1} parent=67 // loop_header
                %s343 = sphi 0, %s347
                %p344 = scmp.ge.s32.totalorder %s343, 1
                %s348 = sphi %s337, %s337
                %s349 = sphi %s334, %s334
              $region71: #{location_mlp_forward.1} parent=67 // loop_header_branch
                %346 = sbr.rel (%p344) target = $region75
              $region72: #{location_mlp_forward.1} parent=67 // loop_body
                %v350 = vld [vmem:[%s348] sm:$0xff]
                %351 = vst [vmem:[%s349] sm:$0xff] %v350
                %v352 = vld [vmem:[%s348 + $0x8] sm:$0xff]
                %353 = vst [vmem:[%s349 + $0x8] sm:$0xff] %v352
                %v354 = vld [vmem:[%s348 + $0x20] sm:$0xff]
                %355 = vst [vmem:[%s349 + $0x10] sm:$0xff] %v354
                %v356 = vld [vmem:[%s348 + $0x28] sm:$0xff]
                %357 = vst [vmem:[%s349 + $0x18] sm:$0xff] %v356
              $region73: #{location_mlp_forward.1} parent=67 // loop_footer
                %s347 = sadd.s32 1, %s343
              $region74: #{location_mlp_forward.1} parent=67 // loop_footer_branch
                %342 = sbr.rel target = $region70
              $region75: #{location_mlp_forward.1} parent=67 // loop_exit
                _
            $region68: #{location_mlp_forward.1} parent=63 // pred_fallthru
              _
            // Predicated region
            $region76: #{location_mlp_forward.1} parent=63 // pred_check
              _
            $region77: #{location_mlp_forward.1} parent=63 // pred_check_branch
              %359 = sbr.rel target = $region79
            $region78: #{location_mlp_forward.1} parent=63 // pred_region
              _
            $region79: #{location_mlp_forward.1} parent=63 // pred_fallthru
              _
          $region64: #{location_mlp_forward.1} parent=59 // pred_fallthru
            _
          %360 = vnop
        $region60: #{location_mlp_forward.1} parent=55 // pred_fallthru
          _
      $region56: #{location_mlp_forward.1} parent=5 // pred_fallthru
        _
      %p361 = scmp.le.s32.totalorder 1, %s17
      %p362 = scmp.lt.s32.totalorder %s17, 3
      %p363 = pnand %p361, %p362
      %p364 = pneg %p363
      // Predicated region
      $region80: #{location_mlp_forward.1} parent=5 // pred_check
        _
      $region81: #{location_mlp_forward.1} parent=5 // pred_check_branch
        %366 = sbr.rel (%p363) target = $region83
      $region82: #{location_mlp_forward.1} parent=5 // pred_region
        %s367 = ssub.s32 %s17, 1
        %s368 = sand.u32 %s30, 1
        %s369 = sand.u32 %s30, 1
        %s370 = smul.addr %s369, 32
        %s371 = scalar_lea.vmem [#allocation2], %s370
        // Predicated region
        $region84: #{location_mlp_forward.1} parent=82 // pred_check
          %p372 = pneg %p43
        $region85: #{location_mlp_forward.1} parent=82 // pred_check_branch
          %374 = sbr.rel (%p372) target = $region87
        $region86: #{location_mlp_forward.1} parent=82 // pred_region
          _
        $region87: #{location_mlp_forward.1} parent=82 // pred_fallthru
          _
        %s375 = sand.u32 %s30, 1
        %s376 = sand.u32 %s30, 1
        %s377 = smul.addr %s376, 32
        %s378 = scalar_lea.vmem [#allocation2], %s377
        %p379 = pneg %p43
        %p380 = pneg %p40
        %p381 = pneg %p64
        %p382 = pneg %p61
        %p383 = pneg %p85
        %p384 = pneg %p82
        %p385 = pneg %p106
        %p386 = pneg %p103
        %p387 = pneg %p127
        %p388 = pneg %p124
        %p389 = pneg %p148
        %p390 = pneg %p145
        %p391 = pneg %p169
        %p392 = pneg %p166
        %p393 = pneg %p190
        %p394 = pneg %p187
        %p395 = pneg %p211
        %p396 = pneg %p208
        %p397 = pneg %p232
        %p398 = pneg %p229
        %p399 = pneg %p253
        %p400 = pneg %p250
        %p401 = pneg %p279
        %p402 = pneg %p276
        %s403 = smul.u32 2, %s22
        %p404 = scmp.lt.s32.totalorder %s403, 3
        %s405 = scalar_select %p404, %s403, 3
        %s406 = smul.addr %s405, 4
        %s407 = scalar_lea.vmem %s11, %s406
        %s408 = smul.u32 2, %s22
        %s409 = smul.u32 2, %s22
        %p410 = scmp.lt.s32.totalorder %s409, 3
        %s411 = scalar_select %p410, %s409, 3
        %s412 = smul.addr %s411, 4
        %s413 = scalar_lea.vmem %s11, %s412
        %s414 = smul.u32 2, %s22
        %v415 = vld [vmem:[%s371] sm:$0xff]
        %v416 = vld [vmem:[%s371 + $0x8] sm:$0xff]
        %v417 = vld [vmem:[%s371 + $0x10] sm:$0xf]
        %v418 = vld [vmem:[%s371 + $0x18] sm:$0xf]
        %v419 = vld [vmem:[%s1] sm:$0xff]
        %v420 = vld [vmem:[%s1 + $0x8] sm:$0xff]
        %v421 = vld [vmem:[%s1 + $0x10] sm:$0xff]
        %v422 = vld [vmem:[%s1 + $0x18] sm:$0xff]
        %v423 = vld [vmem:[%s1 + $0x20] sm:$0xff]
        %v424 = vld [vmem:[%s1 + $0x28] sm:$0xff]
        %v425 = vld [vmem:[%s1 + $0x30] sm:$0xff]
        %v426 = vld [vmem:[%s1 + $0x38] sm:$0x1]
        %v427 = vld [vmem:[%s2] sm:$0xff]
        %v428 = vld [vmem:[%s2 + $0x8] sm:$0xff]
        %v429 = vld [vmem:[%s2 + $0x10] sm:$0xff]
        %v430 = vld [vmem:[%s2 + $0x18] sm:$0xff]
        %v431 = vld [vmem:[%s2 + $0x20] sm:$0xff]
        %v432 = vld [vmem:[%s2 + $0x28] sm:$0xff]
        %v433 = vld [vmem:[%s2 + $0x30] sm:$0xff]
        %v434 = vld [vmem:[%s2 + $0x38] sm:$0x1]
        %436 = vset.pattern.permute.xlu0 0
        %437 = vperm.xlu0 %436, %v427
        %v438 = vpop.permute.xlu0 %437
        %441 = vset.pattern.permute.xlu0 0
        %442 = vperm.xlu0 %441, %v428
        %v443 = vpop.permute.xlu0 %442
        %446 = vset.pattern.permute.xlu0 0
        %447 = vperm.xlu0 %446, %v429
        %v448 = vpop.permute.xlu0 %447
        %451 = vset.pattern.permute.xlu0 0
        %452 = vperm.xlu0 %451, %v430
        %v453 = vpop.permute.xlu0 %452
        %456 = vset.pattern.permute.xlu0 0
        %457 = vperm.xlu0 %456, %v431
        %v458 = vpop.permute.xlu0 %457
        %461 = vset.pattern.permute.xlu0 0
        %462 = vperm.xlu0 %461, %v432
        %v463 = vpop.permute.xlu0 %462
        %466 = vset.pattern.permute.xlu0 0
        %467 = vperm.xlu0 %466, %v433
        %v468 = vpop.permute.xlu0 %467
        %471 = vset.pattern.permute.xlu0 0
        %472 = vperm.xlu0 %471, %v434
        %v473 = vpop.permute.xlu0 %472
        %vm475 = vcmask 97280
        %v477 = vsel %vm475, %v419, 0
        %v480 = vsel %vm475, %v420, 0
        %v483 = vsel %vm475, %v421, 0
        %v486 = vsel %vm475, %v422, 0
        %v489 = vsel %vm475, %v423, 0
        %v492 = vsel %vm475, %v424, 0
        %v495 = vsel %vm475, %v425, 0
        %v498 = vsel %vm475, %v426, 0
        %vm500 = vcmask 1043456
        %v502 = vsel %vm500, %v417, 0
        %v505 = vsel %vm500, %v418, 0
        %507 = vmatpush.msra.mxu0 0.0
        %508 = vmatpush.msra.mxu0 0.0
        %509 = vmatpush.msra.mxu0 0.0
        %510 = vmatpush.msra.mxu0 0.0
        %511 = vmatpush.msra.mxu0 0.0
        %512 = vmatpush.msra.mxu0 0.0
        %513 = vmatpush.msra.mxu0 0.0
        %514 = vmatpush.msra.mxu0 0.0
        %515 = vmatpush.msra.mxu0 0.0
        %516 = vmatpush.msra.mxu0 0.0
        %517 = vmatpush.msra.mxu0 0.0
        %518 = vmatpush.msra.mxu0 0.0
        %519 = vmatpush.msra.mxu0 0.0
        %520 = vmatpush.msra.mxu0 0.0
        %521 = vmatpush.msra.mxu0 %v502
        %522 = vmatpush.msra.mxu0 %v415
        %523 = vmatmul.f32.gmra.mxu0 %v477
        %v524 = vpop.f32.mrf.mxu0
        %v525 = vadd.f32 %v438, %v524
        %526 = vmatmul.f32.gmra.mxu0 %v480
        %v527 = vpop.f32.mrf.mxu0
        %v528 = vadd.f32 %v443, %v527
        %529 = vmatmul.f32.gmra.mxu0 %v483
        %v530 = vpop.f32.mrf.mxu0
        %v531 = vadd.f32 %v448, %v530
        %532 = vmatmul.f32.gmra.mxu0 %v486
        %v533 = vpop.f32.mrf.mxu0
        %v534 = vadd.f32 %v453, %v533
        %535 = vmatmul.f32.gmra.mxu0 %v489
        %v536 = vpop.f32.mrf.mxu0
        %v537 = vadd.f32 %v458, %v536
        %538 = vmatmul.f32.gmra.mxu0 %v492
        %v539 = vpop.f32.mrf.mxu0
        %v540 = vadd.f32 %v463, %v539
        %541 = vmatmul.f32.gmra.mxu0 %v495
        %v542 = vpop.f32.mrf.mxu0
        %v543 = vadd.f32 %v468, %v542
        %544 = vmatmul.f32.gmra.mxu0 %v498
        %v545 = vpop.f32.mrf.mxu0
        %v546 = vadd.f32 %v473, %v545
        %547 = vdwg.mxu0
        %548 = vmatpush.msra.mxu0 0.0
        %549 = vmatpush.msra.mxu0 0.0
        %550 = vmatpush.msra.mxu0 0.0
        %551 = vmatpush.msra.mxu0 0.0
        %552 = vmatpush.msra.mxu0 0.0
        %553 = vmatpush.msra.mxu0 0.0
        %554 = vmatpush.msra.mxu0 0.0
        %555 = vmatpush.msra.mxu0 0.0
        %556 = vmatpush.msra.mxu0 0.0
        %557 = vmatpush.msra.mxu0 0.0
        %558 = vmatpush.msra.mxu0 0.0
        %559 = vmatpush.msra.mxu0 0.0
        %560 = vmatpush.msra.mxu0 0.0
        %561 = vmatpush.msra.mxu0 0.0
        %562 = vmatpush.msra.mxu0 %v505
        %563 = vmatpush.msra.mxu0 %v416
        %564 = vmatmul.f32.gmra.mxu0 %v477
        %v565 = vpop.f32.mrf.mxu0
        %v566 = vadd.f32 %v438, %v565
        %567 = vmatmul.f32.gmra.mxu0 %v480
        %v568 = vpop.f32.mrf.mxu0
        %v569 = vadd.f32 %v443, %v568
        %570 = vmatmul.f32.gmra.mxu0 %v483
        %v571 = vpop.f32.mrf.mxu0
        %v572 = vadd.f32 %v448, %v571
        %573 = vmatmul.f32.gmra.mxu0 %v486
        %v574 = vpop.f32.mrf.mxu0
        %v575 = vadd.f32 %v453, %v574
        %576 = vmatmul.f32.gmra.mxu0 %v489
        %v577 = vpop.f32.mrf.mxu0
        %v578 = vadd.f32 %v458, %v577
        %579 = vmatmul.f32.gmra.mxu0 %v492
        %v580 = vpop.f32.mrf.mxu0
        %v581 = vadd.f32 %v463, %v580
        %582 = vmatmul.f32.gmra.mxu0 %v495
        %v583 = vpop.f32.mrf.mxu0
        %v584 = vadd.f32 %v468, %v583
        %585 = vmatmul.f32.gmra.mxu0 %v498
        %v586 = vpop.f32.mrf.mxu0
        %v587 = vadd.f32 %v473, %v586
        %588 = vdwg.mxu0
        %v589 = vtanh.pop %v525
        %v590 = vtanh.pop %v566
        %v591 = vtanh.pop %v528
        %v592 = vtanh.pop %v569
        %v593 = vtanh.pop %v531
        %v594 = vtanh.pop %v572
        %v595 = vtanh.pop %v534
        %v596 = vtanh.pop %v575
        %v597 = vtanh.pop %v537
        %v598 = vtanh.pop %v578
        %v599 = vtanh.pop %v540
        %v600 = vtanh.pop %v581
        %v601 = vtanh.pop %v543
        %v602 = vtanh.pop %v584
        %v603 = vtanh.pop %v546
        %v604 = vtanh.pop %v587
        %v605 = vld [vmem:[%s3] sm:$0xff]
        %v606 = vld [vmem:[%s3 + $0x8] sm:$0xff]
        %v607 = vld [vmem:[%s3 + $0x10] sm:$0xff]
        %v608 = vld [vmem:[%s3 + $0x18] sm:$0xff]
        %v609 = vld [vmem:[%s3 + $0x20] sm:$0x7]
        %v610 = vld [vmem:[%s4] sm:$0xff]
        %v611 = vld [vmem:[%s4 + $0x8] sm:$0xff]
        %v612 = vld [vmem:[%s4 + $0x10] sm:$0xff]
        %v613 = vld [vmem:[%s4 + $0x18] sm:$0xff]
        %v614 = vld [vmem:[%s4 + $0x20] sm:$0x7]
        %616 = vset.pattern.permute.xlu0 0
        %617 = vperm.xlu0 %616, %v610
        %v618 = vpop.permute.xlu0 %617
        %621 = vset.pattern.permute.xlu0 0
        %622 = vperm.xlu0 %621, %v611
        %v623 = vpop.permute.xlu0 %622
        %626 = vset.pattern.permute.xlu0 0
        %627 = vperm.xlu0 %626, %v612
        %v628 = vpop.permute.xlu0 %627
        %631 = vset.pattern.permute.xlu0 0
        %632 = vperm.xlu0 %631, %v613
        %v633 = vpop.permute.xlu0 %632
        %636 = vset.pattern.permute.xlu0 0
        %637 = vperm.xlu0 %636, %v614
        %v638 = vpop.permute.xlu0 %637
        %vm640 = vcmask 465920
        %v642 = vsel %vm640, %v605, 0
        %v645 = vsel %vm640, %v606, 0
        %v648 = vsel %vm640, %v607, 0
        %v651 = vsel %vm640, %v608, 0
        %v654 = vsel %vm640, %v609, 0
        %vm656 = vcmask 1040384
        %v658 = vsel %vm656, %v603, 0
        %v661 = vsel %vm656, %v604, 0
        %663 = vmatpush.msra.mxu0 0.0
        %664 = vmatpush.msra.mxu0 0.0
        %665 = vmatpush.msra.mxu0 0.0
        %666 = vmatpush.msra.mxu0 0.0
        %667 = vmatpush.msra.mxu0 0.0
        %668 = vmatpush.msra.mxu0 0.0
        %669 = vmatpush.msra.mxu0 0.0
        %670 = vmatpush.msra.mxu0 0.0
        %671 = vmatpush.msra.mxu0 %v658
        %672 = vmatpush.msra.mxu0 %v601
        %673 = vmatpush.msra.mxu0 %v599
        %674 = vmatpush.msra.mxu0 %v597
        %675 = vmatpush.msra.mxu0 %v595
        %676 = vmatpush.msra.mxu0 %v593
        %677 = vmatpush.msra.mxu0 %v591
        %678 = vmatpush.msra.mxu0 %v589
        %679 = vmatmul.f32.gmra.mxu0 %v642
        %v680 = vpop.f32.mrf.mxu0
        %v681 = vadd.f32 %v618, %v680
        %682 = vmatmul.f32.gmra.mxu0 %v645
        %v683 = vpop.f32.mrf.mxu0
        %v684 = vadd.f32 %v623, %v683
        %685 = vmatmul.f32.gmra.mxu0 %v648
        %v686 = vpop.f32.mrf.mxu0
        %v687 = vadd.f32 %v628, %v686
        %688 = vmatmul.f32.gmra.mxu0 %v651
        %v689 = vpop.f32.mrf.mxu0
        %v690 = vadd.f32 %v633, %v689
        %691 = vmatmul.f32.gmra.mxu0 %v654
        %v692 = vpop.f32.mrf.mxu0
        %v693 = vadd.f32 %v638, %v692
        %694 = vdwg.mxu0
        %695 = vmatpush.msra.mxu0 0.0
        %696 = vmatpush.msra.mxu0 0.0
        %697 = vmatpush.msra.mxu0 0.0
        %698 = vmatpush.msra.mxu0 0.0
        %699 = vmatpush.msra.mxu0 0.0
        %700 = vmatpush.msra.mxu0 0.0
        %701 = vmatpush.msra.mxu0 0.0
        %702 = vmatpush.msra.mxu0 0.0
        %703 = vmatpush.msra.mxu0 %v661
        %704 = vmatpush.msra.mxu0 %v602
        %705 = vmatpush.msra.mxu0 %v600
        %706 = vmatpush.msra.mxu0 %v598
        %707 = vmatpush.msra.mxu0 %v596
        %708 = vmatpush.msra.mxu0 %v594
        %709 = vmatpush.msra.mxu0 %v592
        %710 = vmatpush.msra.mxu0 %v590
        %711 = vmatmul.f32.gmra.mxu0 %v642
        %v712 = vpop.f32.mrf.mxu0
        %v713 = vadd.f32 %v618, %v712
        %714 = vmatmul.f32.gmra.mxu0 %v645
        %v715 = vpop.f32.mrf.mxu0
        %v716 = vadd.f32 %v623, %v715
        %717 = vmatmul.f32.gmra.mxu0 %v648
        %v718 = vpop.f32.mrf.mxu0
        %v719 = vadd.f32 %v628, %v718
        %720 = vmatmul.f32.gmra.mxu0 %v651
        %v721 = vpop.f32.mrf.mxu0
        %v722 = vadd.f32 %v633, %v721
        %723 = vmatmul.f32.gmra.mxu0 %v654
        %v724 = vpop.f32.mrf.mxu0
        %v725 = vadd.f32 %v638, %v724
        %726 = vdwg.mxu0
        %v727 = vtanh.pop %v681
        %v728 = vtanh.pop %v713
        %v729 = vtanh.pop %v684
        %v730 = vtanh.pop %v716
        %v731 = vtanh.pop %v687
        %v732 = vtanh.pop %v719
        %v733 = vtanh.pop %v690
        %v734 = vtanh.pop %v722
        %v735 = vtanh.pop %v693
        %v736 = vtanh.pop %v725
        %v737 = vld [vmem:[%s5] sm:$0xff]
        %v738 = vld [vmem:[%s5 + $0x8] sm:$0xff]
        %v739 = vld [vmem:[%s5 + $0x10] sm:$0xff]
        %v740 = vld [vmem:[%s5 + $0x18] sm:$0xff]
        %v741 = vld [vmem:[%s5 + $0x20] sm:$0x7]
        %v742 = vld [vmem:[%s6] sm:$0xff]
        %v743 = vld [vmem:[%s6 + $0x8] sm:$0xff]
        %v744 = vld [vmem:[%s6 + $0x10] sm:$0xff]
        %v745 = vld [vmem:[%s6 + $0x18] sm:$0xff]
        %v746 = vld [vmem:[%s6 + $0x20] sm:$0x7]
        %748 = vset.pattern.permute.xlu0 0
        %749 = vperm.xlu0 %748, %v742
        %v750 = vpop.permute.xlu0 %749
        %753 = vset.pattern.permute.xlu0 0
        %754 = vperm.xlu0 %753, %v743
        %v755 = vpop.permute.xlu0 %754
        %758 = vset.pattern.permute.xlu0 0
        %759 = vperm.xlu0 %758, %v744
        %v760 = vpop.permute.xlu0 %759
        %763 = vset.pattern.permute.xlu0 0
        %764 = vperm.xlu0 %763, %v745
        %v765 = vpop.permute.xlu0 %764
        %768 = vset.pattern.permute.xlu0 0
        %769 = vperm.xlu0 %768, %v746
        %v770 = vpop.permute.xlu0 %769
        %vm772 = vcmask 285696
        %v774 = vsel %vm772, %v737, 0
        %v777 = vsel %vm772, %v738, 0
        %v780 = vsel %vm772, %v739, 0
        %v783 = vsel %vm772, %v740, 0
        %v786 = vsel %vm772, %v741, 0
        %vm788 = vcmask 1042432
        %v790 = vsel %vm788, %v735, 0
        %v793 = vsel %vm788, %v736, 0
        %795 = vmatpush.msra.mxu0 0.0
        %796 = vmatpush.msra.mxu0 0.0
        %797 = vmatpush.msra.mxu0 0.0
        %798 = vmatpush.msra.mxu0 0.0
        %799 = vmatpush.msra.mxu0 0.0
        %800 = vmatpush.msra.mxu0 0.0
        %801 = vmatpush.msra.mxu0 0.0
        %802 = vmatpush.msra.mxu0 0.0
        %803 = vmatpush.msra.mxu0 0.0
        %804 = vmatpush.msra.mxu0 0.0
        %805 = vmatpush.msra.mxu0 0.0
        %806 = vmatpush.msra.mxu0 %v790
        %807 = vmatpush.msra.mxu0 %v733
        %808 = vmatpush.msra.mxu0 %v731
        %809 = vmatpush.msra.mxu0 %v729
        %810 = vmatpush.msra.mxu0 %v727
        %811 = vmatmul.f32.gmra.mxu0 %v774
        %v812 = vpop.f32.mrf.mxu0
        %v813 = vadd.f32 %v750, %v812
        %814 = vmatmul.f32.gmra.mxu0 %v777
        %v815 = vpop.f32.mrf.mxu0
        %v816 = vadd.f32 %v755, %v815
        %817 = vmatmul.f32.gmra.mxu0 %v780
        %v818 = vpop.f32.mrf.mxu0
        %v819 = vadd.f32 %v760, %v818
        %820 = vmatmul.f32.gmra.mxu0 %v783
        %v821 = vpop.f32.mrf.mxu0
        %v822 = vadd.f32 %v765, %v821
        %823 = vmatmul.f32.gmra.mxu0 %v786
        %v824 = vpop.f32.mrf.mxu0
        %v825 = vadd.f32 %v770, %v824
        %826 = vdwg.mxu0
        %827 = vmatpush.msra.mxu0 0.0
        %828 = vmatpush.msra.mxu0 0.0
        %829 = vmatpush.msra.mxu0 0.0
        %830 = vmatpush.msra.mxu0 0.0
        %831 = vmatpush.msra.mxu0 0.0
        %832 = vmatpush.msra.mxu0 0.0
        %833 = vmatpush.msra.mxu0 0.0
        %834 = vmatpush.msra.mxu0 0.0
        %835 = vmatpush.msra.mxu0 0.0
        %836 = vmatpush.msra.mxu0 0.0
        %837 = vmatpush.msra.mxu0 0.0
        %838 = vmatpush.msra.mxu0 %v793
        %839 = vmatpush.msra.mxu0 %v734
        %840 = vmatpush.msra.mxu0 %v732
        %841 = vmatpush.msra.mxu0 %v730
        %842 = vmatpush.msra.mxu0 %v728
        %843 = vmatmul.f32.gmra.mxu0 %v774
        %v844 = vpop.f32.mrf.mxu0
        %v845 = vadd.f32 %v750, %v844
        %846 = vmatmul.f32.gmra.mxu0 %v777
        %v847 = vpop.f32.mrf.mxu0
        %v848 = vadd.f32 %v755, %v847
        %849 = vmatmul.f32.gmra.mxu0 %v780
        %v850 = vpop.f32.mrf.mxu0
        %v851 = vadd.f32 %v760, %v850
        %852 = vmatmul.f32.gmra.mxu0 %v783
        %v853 = vpop.f32.mrf.mxu0
        %v854 = vadd.f32 %v765, %v853
        %855 = vmatmul.f32.gmra.mxu0 %v786
        %v856 = vpop.f32.mrf.mxu0
        %v857 = vadd.f32 %v770, %v856
        %858 = vdwg.mxu0
        %v859 = vtanh.pop %v813
        %v860 = vtanh.pop %v845
        %v861 = vtanh.pop %v816
        %v862 = vtanh.pop %v848
        %v863 = vtanh.pop %v819
        %v864 = vtanh.pop %v851
        %v865 = vtanh.pop %v822
        %v866 = vtanh.pop %v854
        %v867 = vtanh.pop %v825
        %v868 = vtanh.pop %v857
        %v869 = vld [vmem:[%s7] sm:$0x7]
        %v870 = vld [vmem:[%s8] sm:$0x7]
        %872 = vset.pattern.permute.xlu0 0
        %873 = vperm.xlu0 %872, %v870
        %v874 = vpop.permute.xlu0 %873
        %v877 = vsel %vm772, %v869, 0
        %v880 = vsel %vm788, %v867, 0
        %v883 = vsel %vm788, %v868, 0
        %885 = vmatpush.msra.mxu0 0.0
        %886 = vmatpush.msra.mxu0 0.0
        %887 = vmatpush.msra.mxu0 0.0
        %888 = vmatpush.msra.mxu0 0.0
        %889 = vmatpush.msra.mxu0 0.0
        %890 = vmatpush.msra.mxu0 0.0
        %891 = vmatpush.msra.mxu0 0.0
        %892 = vmatpush.msra.mxu0 0.0
        %893 = vmatpush.msra.mxu0 0.0
        %894 = vmatpush.msra.mxu0 0.0
        %895 = vmatpush.msra.mxu0 0.0
        %896 = vmatpush.msra.mxu0 %v880
        %897 = vmatpush.msra.mxu0 %v865
        %898 = vmatpush.msra.mxu0 %v863
        %899 = vmatpush.msra.mxu0 %v861
        %900 = vmatpush.msra.mxu0 %v859
        %901 = vmatmul.f32.gmra.mxu0 %v877
        %v902 = vpop.f32.mrf.mxu0
        %v903 = vadd.f32 %v874, %v902
        %904 = vdwg.mxu0
        %905 = vmatpush.msra.mxu0 0.0
        %906 = vmatpush.msra.mxu0 0.0
        %907 = vmatpush.msra.mxu0 0.0
        %908 = vmatpush.msra.mxu0 0.0
        %909 = vmatpush.msra.mxu0 0.0
        %910 = vmatpush.msra.mxu0 0.0
        %911 = vmatpush.msra.mxu0 0.0
        %912 = vmatpush.msra.mxu0 0.0
        %913 = vmatpush.msra.mxu0 0.0
        %914 = vmatpush.msra.mxu0 0.0
        %915 = vmatpush.msra.mxu0 0.0
        %916 = vmatpush.msra.mxu0 %v883
        %917 = vmatpush.msra.mxu0 %v866
        %918 = vmatpush.msra.mxu0 %v864
        %919 = vmatpush.msra.mxu0 %v862
        %920 = vmatpush.msra.mxu0 %v860
        %921 = vmatmul.f32.gmra.mxu0 %v877
        %v922 = vpop.f32.mrf.mxu0
        %v923 = vadd.f32 %v874, %v922
        %924 = vdwg.mxu0
        %v925 = vsel %vm788, %v903, -inf
        %v926 = vrot.slane %v925, 4
        %v927 = vmax.f32 %v925, %v926
        %v928 = vrot.slane %v927, 2
        %v929 = vmax.f32 %v927, %v928
        %v930 = vrot.slane %v929, 1
        %v931 = vmax.f32 %v929, %v930
        %v932 = vsel %vm788, %v923, -inf
        %v933 = vrot.slane %v932, 4
        %v934 = vmax.f32 %v932, %v933
        %v935 = vrot.slane %v934, 2
        %v936 = vmax.f32 %v934, %v935
        %v937 = vrot.slane %v936, 1
        %v938 = vmax.f32 %v936, %v937
        %v939 = vsub.f32 %v903, %v931
        %v940 = vsub.f32 %v923, %v938
        %v941 = vmul.f32 %v939, 1.442695
        %v942 = vpow.pop %v941
        %v943 = vmul.f32 %v940, 1.442695
        %v944 = vpow.pop %v943
        %v945 = vsel %vm788, %v942, 0.0
        %v946 = vrot.slane %v945, 4
        %v947 = vadd.f32 %v945, %v946
        %v948 = vrot.slane %v947, 2
        %v949 = vadd.f32 %v947, %v948
        %v950 = vrot.slane %v949, 1
        %v951 = vadd.f32 %v949, %v950
        %v952 = vsel %vm788, %v944, 0.0
        %v953 = vrot.slane %v952, 4
        %v954 = vadd.f32 %v952, %v953
        %v955 = vrot.slane %v954, 2
        %v956 = vadd.f32 %v954, %v955
        %v957 = vrot.slane %v956, 1
        %v958 = vadd.f32 %v956, %v957
        %v959 = vrcp.pop %v951
        %v960 = vrcp.pop %v958
        %v961 = vmul.f32 %v942, %v959
        %v962 = vmul.f32 %v944, %v960
        %v963 = vld [vmem:[%s9] sm:$0x7]
        %965 = vset.pattern.permute.xlu0 0
        %966 = vperm.xlu0 %965, %v963
        %v967 = vpop.permute.xlu0 %966
        %v969 = vmul.f32 %v961, %v967
        %v970 = vmul.f32 %v962, %v967
        %v971 = vld [vmem:[%s10] sm:$0x7]
        %973 = vset.pattern.permute.xlu0 0
        %974 = vperm.xlu0 %973, %v971
        %v975 = vpop.permute.xlu0 %974
        %v977 = vadd.f32 %v969, %v975
        %v978 = vadd.f32 %v970, %v975
        %v981 = vrot.slane %v978, 4
        %v982 = vsel %vm500, %v977, %v981
        %984 = vst [vmem:[%s413] sm:$0x77] %v982
        %s985 = smul.u32 2, %s22
        %p986 = scmp.lt.s32.totalorder %s985, 3
        %s987 = scalar_select %p986, %s985, 3
        %s988 = smul.addr %s987, 4
        %s989 = scalar_lea.vmem %s11, %s988
        // Predicated region
        $region88: #{location_mlp_forward.1} parent=82 // pred_check
          %p990 = pneg %p276
        $region89: #{location_mlp_forward.1} parent=82 // pred_check_branch
          %992 = sbr.rel (%p990) target = $region91
        $region90: #{location_mlp_forward.1} parent=82 // pred_region
          %s993 = smul.u32 2, %s22
        $region91: #{location_mlp_forward.1} parent=82 // pred_fallthru
          _
      $region83: #{location_mlp_forward.1} parent=5 // pred_fallthru
        _
      %p994 = scmp.le.s32.totalorder 2, %s17
      // Predicated region
      $region92: #{location_mlp_forward.1} parent=5 // pred_check
        %p995 = pneg %p994
      $region93: #{location_mlp_forward.1} parent=5 // pred_check_branch
        %997 = sbr.rel (%p995) target = $region95
      $region94: #{location_mlp_forward.1} parent=5 // pred_region
        %s998 = ssub.s32 %s17, 2
        // Predicated region
        $region96: #{location_mlp_forward.1} parent=94 // pred_check
          %p999 = pneg %p282
        $region97: #{location_mlp_forward.1} parent=94 // pred_check_branch
          %1001 = sbr.rel (%p999) target = $region99
        $region98: #{location_mlp_forward.1} parent=94 // pred_region
          %s1002 = smul.u32 2, %s23
          %p1003 = scmp.lt.s32.totalorder %s1002, 3
          %s1004 = scalar_select %p1003, %s1002, 3
          %s1005 = smul.addr %s1004, 4
          %s1006 = scalar_lea.vmem %s11, %s1005
        $region99: #{location_mlp_forward.1} parent=94 // pred_fallthru
          _
      $region95: #{location_mlp_forward.1} parent=5 // pred_fallthru
        _
    $region6: #{location_mlp_forward.1} parent=1 // loop_footer
      %s21 = sadd.s32 1, %s17
    $region7: #{location_mlp_forward.1} parent=1 // loop_footer_branch
      %16 = sbr.rel target = $region3
    $region8: #{location_mlp_forward.1} parent=1 // loop_exit
      _

</llo_original>
